<compile_context>
chip_gen: v7x
topology: tpu7x:2x2x1
jax: 0.10.0
libtpu: 0.0.40
codegen_flags: <defaults>
</compile_context>

<pallas_src>
import jax
import jax.numpy as jnp
from jax.experimental import pallas as pl
from jax.experimental.pallas import tpu as pltpu


def _drop_path_kernel(x_ref, scale_ref, o_ref):
    # x_ref/o_ref: (tile_b, tile_n) VMEM tile; scale_ref: (tile_b, 1) VMEM.
    # scale is 0.0 or 1/keep_prob (pre-folded in the wrapper) -> one VPU mul,
    # broadcast along the lane axis.
    o_ref[...] = x_ref[...] * scale_ref[...]


def _pick_tile(dim: int, target: int, align: int) -> int:
    """Largest tile <= target that is a multiple of `align`, or the full dim."""
    if dim <= target:
        return dim
    t = (target // align) * align
    return max(t, align)


def drop_path(x, key, drop_prob: float = 0.0, training: bool = False):
    """Pallas-backed stochastic depth, per sample (batch axis first)."""
    if drop_prob == 0.0 or not training:
        return x
    keep_prob = 1.0 - drop_prob

    orig_shape = x.shape
    B = orig_shape[0]
    x2 = x.reshape(B, -1)                      # lane-dense (B, N), free reshape
    N = x2.shape[1]

    # Per-sample binary mask (same math as torch: floor(keep_prob + rand)),
    # with 1/keep_prob folded in so the kernel body is a single multiply.
    u = jax.random.uniform(key, (B,), dtype=jnp.float32)
    scale = (jnp.floor(keep_prob + u) * (1.0 / keep_prob)).astype(x.dtype)
    scale = scale.reshape(B, 1)

    # Sublane alignment depends on packing: 8 rows for 4-byte, 16 for 2-byte,
    # 32 for 1-byte dtypes.  Lane dim aligned to 128.
    itemsize = jnp.dtype(x.dtype).itemsize
    row_align = 8 * max(1, 4 // itemsize)

    # Target ~2 MiB per (x) block: big enough to sit near the HBM roofline,
    # small enough that in+out double-buffering (~8 MiB) fits the default
    # scoped-VMEM limit on every chip generation.
    target_block_bytes = 2 * 1024 * 1024
    tile_b = _pick_tile(B, 256, row_align)
    n_target = max(128, target_block_bytes // (itemsize * tile_b))
    tile_n = _pick_tile(N, n_target, 128)

    grid = (pl.cdiv(B, tile_b), pl.cdiv(N, tile_n))

    out = pl.pallas_call(
        _drop_path_kernel,
        out_shape=jax.ShapeDtypeStruct((B, N), x.dtype),
        grid=grid,
        in_specs=[
            pl.BlockSpec((tile_b, tile_n), lambda i, j: (i, j)),
            pl.BlockSpec((tile_b, 1), lambda i, j: (i, 0)),
        ],
        out_specs=pl.BlockSpec((tile_b, tile_n), lambda i, j: (i, j)),
        compiler_params=pltpu.CompilerParams(
            dimension_semantics=("parallel", "parallel"),
        ),
    )(x2, scale)

    return out.reshape(orig_shape)


def drop_path_ref(x, key, drop_prob: float, training: bool):
    """Pure-JAX reference (mirrors the PyTorch drop_path_f)."""
    if drop_prob == 0.0 or not training:
        return x
    keep_prob = 1.0 - drop_prob
    u = jax.random.uniform(key, (x.shape[0],), dtype=jnp.float32)
    mask = jnp.floor(keep_prob + u).reshape((x.shape[0],) + (1,) * (x.ndim - 1))
    return (x / keep_prob * mask.astype(x.dtype)).astype(x.dtype)


if __name__ == "__main__":
    key = jax.random.PRNGKey(0)
    kx, kmask, kx2, kmask2, kx3, kmask3 = jax.random.split(key, 6)

    # Small shape consistent with the module: (B, L, D) = (2, 8, 32).
    B, L, D = 2, 8, 32
    x = jax.random.normal(kx, (B, L, D), dtype=jnp.float32)
    drop_prob = 0.25

    out = drop_path(x, kmask, drop_prob, training=True)
    out = jax.block_until_ready(out)
    ref = drop_path_ref(x, kmask, drop_prob, training=True)
    assert out.shape == x.shape and out.dtype == x.dtype
    assert jnp.allclose(out, ref, atol=1e-5, rtol=1e-5), "mismatch vs reference"

    # Identity paths (eval / drop_prob == 0).
    out_eval = drop_path(x, kmask, drop_prob, training=False)
    assert jnp.array_equal(out_eval, x)
    out_p0 = drop_path(x, kmask, 0.0, training=True)
    assert jnp.array_equal(out_p0, x)

    # Larger f32 shape to exercise a multi-tile (row, col) grid.
    B2, L2, D2 = 16, 64, 256
    x_big = jax.random.normal(kx2, (B2, L2, D2), dtype=jnp.float32)
    out_big = jax.block_until_ready(drop_path(x_big, kmask2, 0.5, training=True))
    ref_big = drop_path_ref(x_big, kmask2, 0.5, training=True)
    assert jnp.allclose(out_big, ref_big, atol=1e-5, rtol=1e-5), "mismatch (big)"

    # bf16 path (different sublane packing / tile sizing).
    x_bf = jax.random.normal(kx3, (4, 32, 128), dtype=jnp.bfloat16)
    out_bf = jax.block_until_ready(drop_path(x_bf, kmask3, 0.2, training=True))
    ref_bf = drop_path_ref(x_bf, kmask3, 0.2, training=True)
    assert out_bf.dtype == jnp.bfloat16
    assert jnp.allclose(out_bf.astype(jnp.float32), ref_bf.astype(jnp.float32),
                        atol=2e-2, rtol=2e-2), "mismatch (bf16)"

    print("KERNEL_OK")
</pallas_src>

<mosaic_0001>
module attributes {stable_mosaic.version = 11 : i64} {
  func.func @_drop_path_kernel(%arg0: i32, %arg1: i32, %arg2: memref<2x256xf32, #tpu.memory_space<vmem>>, %arg3: memref<2x1xf32, #tpu.memory_space<vmem>>, %arg4: memref<2x256xf32, #tpu.memory_space<vmem>>) attributes {dimension_semantics = [#tpu.dimension_semantics<parallel>, #tpu.dimension_semantics<parallel>], iteration_bounds = array<i64: 1, 1>, scalar_prefetch = 0 : i64, scratch_operands = 0 : i64, tpu.core_type = #tpu.core_type<tc>, window_params = [{transform_indices = @transform_0, window_bounds = array<i64: 2, 256>}, {transform_indices = @transform_1, window_bounds = array<i64: 2, 1>}, {transform_indices = @transform_2, window_bounds = array<i64: 2, 256>}]} {
    %c0 = arith.constant 0 : index
    %c0_0 = arith.constant 0 : index
    %0 = vector.load %arg2[%c0, %c0_0] : memref<2x256xf32, #tpu.memory_space<vmem>>, vector<2x256xf32>
    %c0_1 = arith.constant 0 : index
    %c0_2 = arith.constant 0 : index
    %1 = vector.load %arg3[%c0_1, %c0_2] : memref<2x1xf32, #tpu.memory_space<vmem>>, vector<2x1xf32>
    %2 = vector.broadcast %1 : vector<2x1xf32> to vector<2x256xf32>
    %3 = arith.mulf %0, %2 : vector<2x256xf32>
    %c0_3 = arith.constant 0 : index
    %c0_4 = arith.constant 0 : index
    %4 = vector.load %arg4[%c0_3, %c0_4] : memref<2x256xf32, #tpu.memory_space<vmem>>, vector<2x256xf32>
    tpu.vector_store %arg4[%c0_3, %c0_4], %3 {strides = array<i32>} : memref<2x256xf32, #tpu.memory_space<vmem>>, vector<2x256xf32>,
    return
  }
  func.func @transform_0(%arg0: i32, %arg1: i32) -> (i32, i32) {
    %c0_i32 = arith.constant 0 : i32
    return %arg0, %arg1 : i32, i32
  }
  func.func @transform_1(%arg0: i32, %arg1: i32) -> (i32, i32) {
    %c0_i32 = arith.constant 0 : i32
    %c0_i32_0 = arith.constant 0 : i32
    return %arg0, %c0_i32 : i32, i32
  }
  func.func @transform_2(%arg0: i32, %arg1: i32) -> (i32, i32) {
    %c0_i32 = arith.constant 0 : i32
    return %arg0, %arg1 : i32, i32
  }
}

</mosaic_0001>

<llo_original>
// kernel: tpu_custom_call.1
$region0: #{tpu_custom_call.1}
  #allocation0 [shape = 'u32[]', space=smem, size = 0x4, offset = 0x4, fixed_abs, tag = 'smem constant byte address 0x4 - core index']
  #allocation1 [shape = 'u32[144,128]{1,0:T(1,128)}', space=vmem, size = 0x12000, scoped, tag = 'internal scratch']
  %s0 = inlined_call_operand.hbm [shape: f32[2,256], index: 0, kind: input, shape index: {}]
  %s1 = inlined_call_operand.vmem [shape: f32[2,1], index: 1, kind: input, shape index: {}]
  %s2 = inlined_call_operand.hbm [shape: f32[2,256], index: 2, kind: output, shape index: {}]
  %s3 = sld [smem:[#allocation0]]
  $region22: #{tpu_custom_call.1} parent=0
    _
  %s5 = ssub.s32 1, %s3
  %s6 = scalar_select 0, %s5, %s3
  $region1: #{tpu_custom_call.1} parent=0
    #allocation2 [shape = 'u8[2048]{0}', space=vmem, size = 0x800, scoped, tag = 'input window, operand 0, single buffered']
    #allocation3 [shape = 's32[1]{0}', space=sflag, size = 0x4, scoped, tag = 'scoped memory for tpu_custom_call.1']
    #allocation4 [shape = 's32[1]{0}', space=sflag, size = 0x4, scoped, tag = 'scoped memory for tpu_custom_call.1']
    #allocation5 [shape = 'u8[2048]{0}', space=vmem, size = 0x800, scoped, tag = 'output window, operand 0, single buffered']
    %7 = vsyncpa [#allocation3], 0
    %8 = vsyncpa [#allocation4], 0
    // Predicated region
    $region2: #{tpu_custom_call.1} parent=1 // pred_check
      _
    $region3: #{tpu_custom_call.1} parent=1 // pred_check_branch
      %10 = sbr.rel (0) target = $region5
    $region4: #{tpu_custom_call.1} parent=1 // pred_region
      %s12 = ssub.s32 64, 64
      %13 = vsyncadd [#allocation3], %s12
      %s15 = sshll.u32 [#allocation2], 4
      %s16 = int_to_ptr.vmem [resolvable:$true] %s15
      %18 = dma.hbm_to_vmem [thread:$0]  %s0, 64, %s16, [#allocation3]
    $region5: #{tpu_custom_call.1} parent=1 // pred_fallthru
      _
    // Predicated region
    $region6: #{tpu_custom_call.1} parent=1 // pred_check
      _
    $region7: #{tpu_custom_call.1} parent=1 // pred_check_branch
      %20 = sbr.rel (0) target = $region9
    $region8: #{tpu_custom_call.1} parent=1 // pred_region
      _
    $region9: #{tpu_custom_call.1} parent=1 // pred_fallthru
      _
    // Predicated region
    $region10: #{tpu_custom_call.1} parent=1 // pred_check
      _
    $region11: #{tpu_custom_call.1} parent=1 // pred_check_branch
      %22 = sbr.rel (0) target = $region13
    $region12: #{tpu_custom_call.1} parent=1 // pred_region
      %23 = dma.done [#allocation3], 64
    $region13: #{tpu_custom_call.1} parent=1 // pred_fallthru
      _
    %v24 = vld [vmem:[#allocation2] sm:$0xf]
    %v25 = vld [vmem:[%s1] sm:$0x3]
    %27 = vset.pattern.permute.xlu0 0
    %28 = vperm.xlu0 %27, %v25
    %v29 = vpop.permute.xlu0 %28
    %v31 = vunpack.c.l.s4 269488144
    %v32 = vunpack.c.0.s8 %v31
    %v33 = vlaneseq
    %v34 = vshrl.u32 %v33, 7
    %v35 = vsub.s32 %v32, %v34
    %v36 = vrot.slane %v29, %v35
    %v38 = vmul.f32 %v24, %v36
    %39 = vst [vmem:[#allocation5] sm:$0xf] %v38
    // Predicated region
    $region14: #{tpu_custom_call.1} parent=1 // pred_check
      _
    $region15: #{tpu_custom_call.1} parent=1 // pred_check_branch
      %41 = sbr.rel (0) target = $region17
    $region16: #{tpu_custom_call.1} parent=1 // pred_region
      %s43 = ssub.s32 64, 64
      %44 = vsyncadd [#allocation4], %s43
      %s46 = sshll.u32 [#allocation5], 4
      %s47 = int_to_ptr.vmem [resolvable:$true] %s46
      %49 = dma.vmem_to_hbm [thread:$0]  %s47, 64, %s2, [#allocation4]
    $region17: #{tpu_custom_call.1} parent=1 // pred_fallthru
      _
    // Predicated region
    $region18: #{tpu_custom_call.1} parent=1 // pred_check
      _
    $region19: #{tpu_custom_call.1} parent=1 // pred_check_branch
      %51 = sbr.rel (0) target = $region21
    $region20: #{tpu_custom_call.1} parent=1 // pred_region
      %52 = dma.done [#allocation4], 64
    $region21: #{tpu_custom_call.1} parent=1 // pred_fallthru
      _
    %53 = vsyncpa [#allocation3], 1
    %54 = vsyncpa [#allocation4], 1

</llo_original>
